<compile_context>
chip_gen: v6e
topology: v6e:2x2x1
jax: 0.10.0
libtpu: 0.0.40
codegen_flags: <defaults>
</compile_context>

<pallas_src>
import functools

import jax
import jax.numpy as jnp
from jax.experimental import pallas as pl
from jax.experimental.pallas import tpu as pltpu

_LANE = 128
_TWO_TC_MIN_BYTES = 1 << 20  # only bother balancing across 2 TCs above ~1 MiB


@functools.lru_cache(maxsize=1)
def _chip_config():
    """(block_byte_budget, vmem_limit_bytes_or_None, has_two_tensorcores)."""
    kind = ""
    try:
        kind = jax.devices()[0].device_kind.lower()
    except Exception:  # pragma: no cover - no devices / odd backends
        pass
    if "v5" in kind:
        # v5e: 0.82 TB/s HBM — 2 MiB blocks are ~94% of roofline and fit the
        # 16 MiB scoped-VMEM default with double buffering.
        return 2 * 1024 * 1024, None, False
    if "v6" in kind:
        # v6e: 1.3-1.4 TB/s HBM, 128 MiB physical VMEM.
        return 8 * 1024 * 1024, 48 * 1024 * 1024, False
    if "7" in kind:
        # v7x: 3.2 TB/s HBM per TC, 64 MiB physical VMEM, 2 TensorCores/chip.
        return 8 * 1024 * 1024, 40 * 1024 * 1024, True
    # Unknown / older chip: conservative defaults (known-safe everywhere).
    return 2 * 1024 * 1024, None, False


def _act_kernel(x_ref, o_ref, *, act_type: str, negative_slope: float):
    x = x_ref[...]
    if act_type == "relu":
        y = jnp.maximum(x, jnp.zeros_like(x))  # exact in any dtype
    elif act_type == "silu":
        # One EUP transcendental per element: sigmoid(x) = 0.5*(tanh(0.5*x)+1).
        # Computed in f32 (matches torch's fp32 opmath for bf16); cast at the store.
        xf = x.astype(jnp.float32)
        sig = 0.5 * (jnp.tanh(0.5 * xf) + 1.0)
        y = xf * sig
    elif act_type == "leakyrelu":
        # f32 opmath + single rounding at the store, for parity with PyTorch on
        # sub-32-bit inputs. The kernel is HBM-bound, so the upcast is free.
        xf = x.astype(jnp.float32)
        y = jnp.where(xf >= 0.0, xf, xf * jnp.float32(negative_slope))
    else:
        raise ValueError("Unsupport activation function!")
    o_ref[...] = y.astype(o_ref.dtype)


@functools.partial(jax.jit, static_argnames=("act_type", "negative_slope"))
def activation_block(x, act_type: str = "leakyrelu", negative_slope: float = 0.1):
    """Pallas implementation of ActivationBlock.forward (elementwise, any shape)."""
    assert act_type in ("silu", "relu", "leakyrelu"), "Unsupport activation function!"

    orig_shape = x.shape
    orig_dtype = x.dtype
    total = x.size
    itemsize = jnp.dtype(orig_dtype).itemsize

    # Sublane packing: 8 rows for 32-bit, 16 for 16-bit, 32 for 8-bit dtypes.
    sub = max(8, 32 // max(itemsize, 1))

    block_bytes, vmem_limit, two_tc = _chip_config()

    # Lane-dense flat view; pad only to a multiple of 128. Row count does NOT need
    # sublane alignment: the BlockSpec block is sublane-aligned and a ragged last
    # block is masked by Pallas.
    n_rows = pl.cdiv(total, _LANE)
    padded_total = n_rows * _LANE
    x_flat = x.reshape(-1)
    if padded_total != total:
        # TODO(synk): for 128-unaligned sizes this pad + trailing slice each cost an
        # extra HBM pass; a prefix-kernel + tiny-tail split (or fusing into the
        # producing conv) would remove them.
        x_flat = jnp.pad(x_flat, (0, padded_total - total))
    x2d = x_flat.reshape(n_rows, _LANE)

    total_bytes = padded_total * itemsize
    max_block_rows = max(sub, (block_bytes // (_LANE * itemsize)) // sub * sub)

    if n_rows < sub:
        # Tiny tensor: a single block equal to the full array (always legal).
        block_rows = n_rows
    elif two_tc and total_bytes >= _TWO_TC_MIN_BYTES:
        # v7x: round to an even number of grid steps so both TensorCores get the
        # same amount of work (avoids e.g. a 2-vs-1 block imbalance).
        pairs = pl.cdiv(n_rows, 2 * max_block_rows)
        block_rows = pl.cdiv(pl.cdiv(n_rows, 2 * pairs), sub) * sub
        block_rows = max(sub, min(block_rows, (n_rows // sub) * sub))
    else:
        # 1-TC chips / small arrays: biggest sublane-aligned block under the budget.
        block_rows = min(max_block_rows, (n_rows // sub) * sub)

    grid = (pl.cdiv(n_rows, block_rows),)  # ragged last block OK (tail masked)

    cp_kwargs = dict(dimension_semantics=("parallel",))
    if vmem_limit is not None:
        cp_kwargs["vmem_limit_bytes"] = int(vmem_limit)
    # TODO(synk): if profiling on v7x shows the grid serializing on one TensorCore,
    # switch this axis to pltpu.CORE_PARALLEL (or pl.core_map over
    # pltpu.create_tensorcore_mesh) — "parallel" is expected to shard across TCs.
    compiler_params = pltpu.CompilerParams(**cp_kwargs)

    kernel = functools.partial(
        _act_kernel, act_type=act_type, negative_slope=float(negative_slope)
    )

    out2d = pl.pallas_call(
        kernel,
        out_shape=jax.ShapeDtypeStruct((n_rows, _LANE), orig_dtype),
        grid=grid,
        in_specs=[pl.BlockSpec((block_rows, _LANE), lambda i: (i, 0))],
        out_specs=pl.BlockSpec((block_rows, _LANE), lambda i: (i, 0)),
        compiler_params=compiler_params,
    )(x2d)

    if padded_total != total:
        return out2d.reshape(-1)[:total].reshape(orig_shape)
    return out2d.reshape(orig_shape)


def _ref_leakyrelu(x, slope=0.1):
    xf = x.astype(jnp.float32)
    return jnp.where(xf >= 0, xf, xf * jnp.float32(slope)).astype(x.dtype)


if __name__ == "__main__":
    key = jax.random.PRNGKey(0)
    # NCHW, small shapes consistent with a conv backbone block.
    x = jax.random.normal(key, (2, 4, 16, 16), dtype=jnp.float32)

    # Default module config: act_type='leakyrelu', slope=0.1.
    y = jax.block_until_ready(activation_block(x, act_type="leakyrelu"))
    assert y.shape == x.shape and y.dtype == x.dtype
    assert jnp.allclose(y, _ref_leakyrelu(x), atol=1e-6, rtol=1e-6)

    # Other supported activations.
    y_relu = jax.block_until_ready(activation_block(x, act_type="relu"))
    assert jnp.allclose(y_relu, jnp.maximum(x, 0.0), atol=1e-6)

    y_silu = jax.block_until_ready(activation_block(x, act_type="silu"))
    assert jnp.allclose(y_silu, x * jax.nn.sigmoid(x), atol=1e-5)

    # Non-128-aligned element count exercises the (rare) padded path.
    x_odd = jax.random.normal(jax.random.PRNGKey(1), (1, 3, 5, 7), dtype=jnp.float32)
    y_odd = jax.block_until_ready(activation_block(x_odd, act_type="leakyrelu"))
    assert y_odd.shape == x_odd.shape
    assert jnp.allclose(y_odd, _ref_leakyrelu(x_odd), atol=1e-6, rtol=1e-6)

    # 128-aligned but sublane-unaligned row count exercises the ragged-last-block
    # path (no pad, no trailing slice).
    x_rag = jax.random.normal(jax.random.PRNGKey(2), (1, 1, 9, 128), dtype=jnp.float32)
    y_rag = jax.block_until_ready(activation_block(x_rag, act_type="silu"))
    assert jnp.allclose(y_rag, x_rag * jax.nn.sigmoid(x_rag), atol=1e-5)

    # bf16 exercises the 16-row sublane packing and f32-opmath leakyrelu.
    x_bf16 = x.astype(jnp.bfloat16)
    y_bf16 = jax.block_until_ready(activation_block(x_bf16, act_type="leakyrelu"))
    assert y_bf16.dtype == jnp.bfloat16
    assert jnp.allclose(
        y_bf16.astype(jnp.float32),
        _ref_leakyrelu(x_bf16).astype(jnp.float32),
        atol=1e-2,
    )

    print("KERNEL_OK")
</pallas_src>

<mosaic_0001>
module attributes {stable_mosaic.version = 11 : i64} {
  func.func @_act_kernel(%arg0: i32, %arg1: memref<16x128xf32, #tpu.memory_space<vmem>>, %arg2: memref<16x128xf32, #tpu.memory_space<vmem>>) attributes {dimension_semantics = [#tpu.dimension_semantics<parallel>], iteration_bounds = array<i64: 1>, scalar_prefetch = 0 : i64, scratch_operands = 0 : i64, tpu.core_type = #tpu.core_type<tc>, window_params = [{transform_indices = @transform_0, window_bounds = array<i64: 16, 128>}, {transform_indices = @transform_1, window_bounds = array<i64: 16, 128>}]} {
    %c0 = arith.constant 0 : index
    %c0_0 = arith.constant 0 : index
    %0 = vector.load %arg1[%c0, %c0_0] : memref<16x128xf32, #tpu.memory_space<vmem>>, vector<16x128xf32>
    %cst = arith.constant 0.000000e+00 : f32
    %1 = vector.broadcast %cst : f32 to vector<16x128xf32>
    %2 = arith.cmpf oge, %0, %1 : vector<16x128xf32>
    %cst_1 = arith.constant 1.000000e-01 : f32
    %3 = vector.broadcast %cst_1 : f32 to vector<16x128xf32>
    %4 = arith.mulf %0, %3 : vector<16x128xf32>
    %5 = arith.select %2, %0, %4 : vector<16x128xi1>, vector<16x128xf32>
    %c0_2 = arith.constant 0 : index
    %c0_3 = arith.constant 0 : index
    %6 = vector.load %arg2[%c0_2, %c0_3] : memref<16x128xf32, #tpu.memory_space<vmem>>, vector<16x128xf32>
    tpu.vector_store %arg2[%c0_2, %c0_3], %5 {strides = array<i32>} : memref<16x128xf32, #tpu.memory_space<vmem>>, vector<16x128xf32>,
    return
  }
  func.func @transform_0(%arg0: i32) -> (i32, i32) {
    %c0_i32 = arith.constant 0 : i32
    %c0_i32_0 = arith.constant 0 : i32
    return %arg0, %c0_i32 : i32, i32
  }
  func.func @transform_1(%arg0: i32) -> (i32, i32) {
    %c0_i32 = arith.constant 0 : i32
    %c0_i32_0 = arith.constant 0 : i32
    return %arg0, %c0_i32 : i32, i32
  }
}

</mosaic_0001>

<llo_original>
// kernel: activation_block.1
$region0: #{activation_block.1}
  #allocation0 [shape = 'u32[]', space=smem, size = 0x4, offset = 0x4, fixed_abs, tag = 'smem constant byte address 0x4 - core index']
  #allocation1 [shape = 'u32[144,128]{1,0:T(1,128)}', space=vmem, size = 0x12000, scoped, tag = 'internal scratch']
  %s0 = inlined_call_operand.vmem [shape: f32[16,128], index: 0, kind: input, shape index: {}]
  %s1 = inlined_call_operand.vmem [shape: f32[16,128], index: 1, kind: output, shape index: {}]
  %s2 = sld [smem:[#allocation0]]
  $region14: #{activation_block.1} parent=0
    _
  %s4 = ssub.s32 1, %s2
  %s5 = scalar_select 0, %s4, %s2
  // Predicated region
  $region2: #{activation_block.1} parent=0 // pred_check
    _
  $region3: #{activation_block.1} parent=0 // pred_check_branch
    %7 = sbr.rel (0) target = $region5
  $region4: #{activation_block.1} parent=0 // pred_region
    _
  $region5: #{activation_block.1} parent=0 // pred_fallthru
    _
  %v8 = vld [vmem:[%s0] sm:$0xff]
  %v9 = vld [vmem:[%s0 + $0x8] sm:$0xff]
  %vm10 = vcmp.ge.f32.partialorder %v8, 0.0
  %vm11 = vcmp.ge.f32.partialorder %v9, 0.0
  %v12 = vmul.f32 %v8, 0.1
  %v13 = vmul.f32 %v9, 0.1
  %v14 = vsel %vm10, %v8, %v12
  %v15 = vsel %vm11, %v9, %v13
  %16 = vst [vmem:[%s1] sm:$0xff] %v14
  %17 = vst [vmem:[%s1 + $0x8] sm:$0xff] %v15
  // Predicated region
  $region6: #{activation_block.1} parent=0 // pred_check
    _
  $region7: #{activation_block.1} parent=0 // pred_check_branch
    %19 = sbr.rel (0) target = $region9
  $region8: #{activation_block.1} parent=0 // pred_region
    _
  $region9: #{activation_block.1} parent=0 // pred_fallthru
    _
  // Predicated region
  $region10: #{activation_block.1} parent=0 // pred_check
    _
  $region11: #{activation_block.1} parent=0 // pred_check_branch
    %21 = sbr.rel (0) target = $region13
  $region12: #{activation_block.1} parent=0 // pred_region
    _
  $region13: #{activation_block.1} parent=0 // pred_fallthru
    _

</llo_original>
